<compile_context>
chip_gen: v6e
topology: v6e:2x2x1
jax: 0.10.0
libtpu: 0.0.40
codegen_flags: <defaults>
</compile_context>

<pallas_src>
import jax
import jax.numpy as jnp
from jax.experimental import pallas as pl
from jax.experimental.pallas import tpu as pltpu

Q_MIN = -128.0
Q_MAX = 127.0


def _round_up(x, m):
    return (x + m - 1) // m * m


def _default_mxu_dtype():
    """int8 MXU path on v5e/v6e; bf16 path otherwise (v7x has no int MXU)."""
    try:
        kind = jax.devices()[0].device_kind.lower()
    except Exception:  # pragma: no cover - defensive
        kind = ""
    if "v5" in kind or "v6" in kind:
        return jnp.int8
    return jnp.bfloat16


def _make_kernel(inv_out_scale, out_zp, use_int8_mxu):
    """Matmul + requantize kernel; quant params baked in as compile-time consts.

    Inputs are already-quantized int8 activations and int8 (transposed) weights.
    The int32 accumulator is initialized with the broadcast bias at k == 0 and
    requantized to int8 once in the epilogue.
    """

    def kernel(x_ref, w_ref, b_ref, o_ref, acc_ref):
        k = pl.program_id(2)

        @pl.when(k == 0)
        def _():
            # Fold the bias into the accumulator init (saves an epilogue add).
            acc_ref[...] = jnp.broadcast_to(b_ref[...], acc_ref.shape)

        if use_int8_mxu:
            # Native int8 x int8 -> int32 MXU (v5e/v6e): exact for any K.
            acc_ref[...] += jnp.dot(x_ref[...], w_ref[...],
                                    preferred_element_type=jnp.int32)
        else:
            # bf16 MXU path (v7x has no integer MXU). int8 values are exact in
            # bf16; each tk <= 512 chunk's f32 partial is exact
            # (|partial| <= 512*128*128 < 2^24) and is folded into the int32
            # accumulator, so the full reduction is exact for arbitrary K.
            partial = jnp.dot(x_ref[...].astype(jnp.bfloat16),
                              w_ref[...].astype(jnp.bfloat16),
                              preferred_element_type=jnp.float32)
            acc_ref[...] += partial.astype(jnp.int32)

        @pl.when(k == pl.num_programs(2) - 1)
        def _():
            acc = acc_ref[...].astype(jnp.float32)
            q_out = jnp.clip(jnp.round(acc * inv_out_scale + out_zp), Q_MIN, Q_MAX)
            o_ref[...] = q_out.astype(jnp.int8)

    return kernel


def prepare_quantized_linear(weight, bias,
                             input_scale, input_zero_point,
                             output_scale, output_zero_point,
                             mxu_dtype=None, tn_cap=512):
    """One-time (load-time) prep: transpose the int8 weight [N,K]->[K,N],
    zero-pad to lane-dense multiples, pick N/K tile sizes, precompute
    reciprocals of the quantization scales."""
    if mxu_dtype is None:
        mxu_dtype = _default_mxu_dtype()
    use_int8_mxu = (mxu_dtype == jnp.int8)
    # int8 path: large reduction tiles are exact; bf16 path: keep tk <= 512 so
    # per-chunk f32 partials are exact before folding into int32.
    tk_cap = 2048 if use_int8_mxu else 512

    N, K = weight.shape
    tn = min(tn_cap, _round_up(N, 128))
    tk = min(tk_cap, _round_up(K, 128))
    N_pad = _round_up(N, tn)
    K_pad = _round_up(K, tk)

    w_t = jnp.zeros((K_pad, N_pad), jnp.int8).at[:K, :N].set(weight.T)
    b_p = jnp.zeros((1, N_pad), jnp.int32).at[0, :N].set(bias)
    # TODO(synk): for compute-bound (large-batch) v7x calls a prep-time bf16
    # weight copy would remove the per-step int8->bf16 cast at 2x weight bytes.

    return dict(
        w_t=w_t, b=b_p, N=N, K=K, N_pad=N_pad, K_pad=K_pad, tn=tn, tk=tk,
        use_int8_mxu=use_int8_mxu,
        inv_input_scale=float(1.0 / input_scale),
        input_zero_point=float(input_zero_point),
        inv_output_scale=float(1.0 / output_scale),
        output_zero_point=float(output_zero_point),
    )


def quantized_linear(x, params):
    """x: [B, K] float32 -> [B, N] int8, using pre-prepared weight/bias."""
    B, K = x.shape
    assert K == params["K"], "input feature dim does not match prepared weight"

    tn, tk = params["tn"], params["tk"]
    N_pad, K_pad = params["N_pad"], params["K_pad"]
    use_int8_mxu = params["use_int8_mxu"]

    # int8 tiles pack (32, 128) -> batch tile a multiple of 32; cap 512 keeps
    # weight re-streaming (B_pad/tm passes over W) low for large batches.
    tm = min(512, _round_up(max(B, 1), 32))
    B_pad = _round_up(B, tm)
    grid_m = B_pad // tm

    # Guarantee >= 2 blocks on a "parallel" axis when the batch axis collapses,
    # so v7x's two TensorCores (and megacore) both get work.
    if grid_m == 1 and N_pad // tn == 1 and tn % 256 == 0:
        tn //= 2
    grid_n = N_pad // tn
    grid_k = K_pad // tk

    # Prologue (outside the grid): quantize the activation to int8 ONCE, fused
    # with the pad into a single lane-dense int8 buffer. Multiply by the
    # precomputed reciprocal instead of dividing.
    q_x = jnp.clip(
        jnp.round(x * params["inv_input_scale"] + params["input_zero_point"]),
        Q_MIN, Q_MAX).astype(jnp.int8)
    if (B_pad, K_pad) != (B, K):
        # Zero padding is harmless: padded K columns hit zero weight rows and
        # padded batch rows are sliced off after the kernel.
        q_x = jnp.zeros((B_pad, K_pad), jnp.int8).at[:B, :K].set(q_x)

    kernel = _make_kernel(params["inv_output_scale"],
                          params["output_zero_point"], use_int8_mxu)

    cost = pl.CostEstimate(
        flops=2 * B_pad * N_pad * K_pad,
        transcendentals=0,
        bytes_accessed=(B_pad * K_pad          # int8 activations
                        + K_pad * N_pad        # int8 weights
                        + B_pad * N_pad        # int8 output
                        + 4 * N_pad),          # int32 bias
    )

    out_p = pl.pallas_call(
        kernel,
        out_shape=jax.ShapeDtypeStruct((B_pad, N_pad), jnp.int8),
        grid_spec=pltpu.PrefetchScalarGridSpec(
            num_scalar_prefetch=0,
            grid=(grid_m, grid_n, grid_k),
            in_specs=[
                pl.BlockSpec((tm, tk), lambda i, j, k: (i, k)),   # int8 activations
                pl.BlockSpec((tk, tn), lambda i, j, k: (k, j)),   # int8 weight^T
                pl.BlockSpec((1, tn), lambda i, j, k: (0, j)),    # int32 bias
            ],
            out_specs=pl.BlockSpec((tm, tn), lambda i, j, k: (i, j)),
            scratch_shapes=[pltpu.VMEM((tm, tn), jnp.int32)],
        ),
        compiler_params=pltpu.CompilerParams(
            dimension_semantics=("parallel", "parallel", "arbitrary"),
            vmem_limit_bytes=32 * 1024 * 1024),
        cost_estimate=cost,
    )(q_x, params["w_t"], params["b"])

    return out_p[:B, :params["N"]]


def reference(x, weight, bias,
              input_scale, input_zero_point,
              output_scale, output_zero_point):
    """Pure-JAX reference matching the PyTorch forward exactly."""
    q_in = jnp.clip(jnp.round(x / input_scale + input_zero_point),
                    Q_MIN, Q_MAX).astype(jnp.int8)
    out = (q_in.astype(jnp.int32) @ weight.astype(jnp.int32).T
           + bias.astype(jnp.int32))
    q_out = jnp.clip(jnp.round(out / output_scale + output_zero_point),
                     Q_MIN, Q_MAX).astype(jnp.int8)
    return q_out


if __name__ == "__main__":
    def run_case(B, K, N, input_scale, input_zero_point,
                 output_scale, output_zero_point, key):
        kx, kw, kb = jax.random.split(key, 3)
        x = jax.random.normal(kx, (B, K), dtype=jnp.float32) * 2.0
        weight = jax.random.randint(kw, (N, K), -128, 128,
                                    dtype=jnp.int32).astype(jnp.int8)
        bias = jax.random.randint(kb, (N,), -20000, 20000, dtype=jnp.int32)

        params = prepare_quantized_linear(weight, bias,
                                          input_scale, input_zero_point,
                                          output_scale, output_zero_point)
        out = jax.block_until_ready(quantized_linear(x, params))
        ref = reference(x, weight, bias,
                        input_scale, input_zero_point,
                        output_scale, output_zero_point)

        assert out.dtype == jnp.int8
        assert out.shape == (B, N)
        assert bool(jnp.all(out == ref)), f"mismatch for (B,K,N)=({B},{K},{N})"

    key = jax.random.PRNGKey(0)
    k1, k2 = jax.random.split(key)

    # Small shapes consistent with a Linear layer; power-of-two scales so the
    # multiply-by-reciprocal path is bit-identical to division.
    run_case(8, 32, 16, 0.0625, 3, 4096.0, -2, k1)
    # Exercises batch/feature padding and the dual-TensorCore N-split heuristic.
    run_case(40, 384, 256, 0.125, -1, 8192.0, 1, k2)

    print("KERNEL_OK")
</pallas_src>

<mosaic_0001>
module attributes {stable_mosaic.version = 11 : i64} {
  func.func @kernel(%arg0: i32, %arg1: i32, %arg2: i32, %arg3: memref<32x128xi8, #tpu.memory_space<vmem>>, %arg4: memref<128x128xi8, #tpu.memory_space<vmem>>, %arg5: memref<1x128xi32, #tpu.memory_space<vmem>>, %arg6: memref<32x128xi8, #tpu.memory_space<vmem>>, %arg7: memref<32x128xi32, #tpu.memory_space<vmem>>) attributes {dimension_semantics = [#tpu.dimension_semantics<parallel>, #tpu.dimension_semantics<parallel>, #tpu.dimension_semantics<arbitrary>], iteration_bounds = array<i64: 1, 1, 1>, scalar_prefetch = 0 : i64, scratch_operands = 1 : i64, tpu.core_type = #tpu.core_type<tc>, window_params = [{transform_indices = @transform_0, window_bounds = array<i64: 32, 128>}, {transform_indices = @transform_1, window_bounds = array<i64: 128, 128>}, {transform_indices = @transform_2, window_bounds = array<i64: 1, 128>}, {transform_indices = @transform_3, window_bounds = array<i64: 32, 128>}]} {
    %c0_i32 = arith.constant 0 : i32
    %0 = arith.cmpi eq, %arg2, %c0_i32 : i32
    %1 = arith.extui %0 : i1 to i32
    %c0_i32_0 = arith.constant 0 : i32
    %2 = arith.cmpi ne, %1, %c0_i32_0 : i32
    scf.if %2 {
      %c0_10 = arith.constant 0 : index
      %c0_11 = arith.constant 0 : index
      %15 = vector.load %arg5[%c0_10, %c0_11] : memref<1x128xi32, #tpu.memory_space<vmem>>, vector<1x128xi32>
      %16 = vector.shape_cast %15 : vector<1x128xi32> to vector<1x128xi32>
      %17 = vector.broadcast %16 : vector<1x128xi32> to vector<32x128xi32>
      %c0_12 = arith.constant 0 : index
      %c0_13 = arith.constant 0 : index
      %18 = vector.load %arg7[%c0_12, %c0_13] : memref<32x128xi32, #tpu.memory_space<vmem>>, vector<32x128xi32>
      tpu.vector_store %arg7[%c0_12, %c0_13], %17 {strides = array<i32>} : memref<32x128xi32, #tpu.memory_space<vmem>>, vector<32x128xi32>,
    } else {
    }
    %c0 = arith.constant 0 : index
    %c0_1 = arith.constant 0 : index
    %3 = vector.load %arg3[%c0, %c0_1] : memref<32x128xi8, #tpu.memory_space<vmem>>, vector<32x128xi8>
    %4 = arith.sitofp %3 : vector<32x128xi8> to vector<32x128xbf16>
    %c0_2 = arith.constant 0 : index
    %c0_3 = arith.constant 0 : index
    %5 = vector.load %arg4[%c0_2, %c0_3] : memref<128x128xi8, #tpu.memory_space<vmem>>, vector<128x128xi8>
    %6 = arith.sitofp %5 : vector<128x128xi8> to vector<128x128xbf16>
    %cst = arith.constant dense<0.000000e+00> : vector<32x128xf32>
    %7 = tpu.matmul %4, %6, %cst {dimension_numbers = #tpu.dot_dimension_numbers<[1], [0], [0], [1], [0, 0, 1, 1], [], []>} : vector<32x128xbf16>, vector<128x128xbf16>, vector<32x128xf32> -> vector<32x128xf32>
    %c0_4 = arith.constant 0 : index
    %c0_5 = arith.constant 0 : index
    %8 = vector.load %arg7[%c0_4, %c0_5] : memref<32x128xi32, #tpu.memory_space<vmem>>, vector<32x128xi32>
    %9 = arith.fptosi %7 : vector<32x128xf32> to vector<32x128xi32>
    %10 = arith.addi %8, %9 : vector<32x128xi32>
    %c0_6 = arith.constant 0 : index
    %c0_7 = arith.constant 0 : index
    %11 = vector.load %arg7[%c0_6, %c0_7] : memref<32x128xi32, #tpu.memory_space<vmem>>, vector<32x128xi32>
    tpu.vector_store %arg7[%c0_6, %c0_7], %10 {strides = array<i32>} : memref<32x128xi32, #tpu.memory_space<vmem>>, vector<32x128xi32>,
    %c0_i32_8 = arith.constant 0 : i32
    %12 = arith.cmpi eq, %arg2, %c0_i32_8 : i32
    %13 = arith.extui %12 : i1 to i32
    %c0_i32_9 = arith.constant 0 : i32
    %14 = arith.cmpi ne, %13, %c0_i32_9 : i32
    scf.if %14 {
      %c0_10 = arith.constant 0 : index
      %c0_11 = arith.constant 0 : index
      %15 = vector.load %arg7[%c0_10, %c0_11] : memref<32x128xi32, #tpu.memory_space<vmem>>, vector<32x128xi32>
      %16 = arith.sitofp %15 : vector<32x128xi32> to vector<32x128xf32>
      %cst_12 = arith.constant 2.44140625E-4 : f32
      %17 = vector.broadcast %cst_12 : f32 to vector<32x128xf32>
      %18 = arith.mulf %16, %17 : vector<32x128xf32>
      %cst_13 = arith.constant -2.000000e+00 : f32
      %19 = vector.broadcast %cst_13 : f32 to vector<32x128xf32>
      %20 = arith.addf %18, %19 : vector<32x128xf32>
      %21 = math.roundeven %20 : vector<32x128xf32>
      %cst_14 = arith.constant -1.280000e+02 : f32
      %cst_15 = arith.constant 1.270000e+02 : f32
      %22 = vector.broadcast %cst_14 : f32 to vector<32x128xf32>
      %23 = arith.maximumf %22, %21 : vector<32x128xf32>
      %24 = vector.broadcast %cst_15 : f32 to vector<32x128xf32>
      %25 = arith.minimumf %24, %23 : vector<32x128xf32>
      %26 = arith.fptosi %25 : vector<32x128xf32> to vector<32x128xi8>
      %c0_16 = arith.constant 0 : index
      %c0_17 = arith.constant 0 : index
      %27 = vector.load %arg6[%c0_16, %c0_17] : memref<32x128xi8, #tpu.memory_space<vmem>>, vector<32x128xi8>
      tpu.vector_store %arg6[%c0_16, %c0_17], %26 {strides = array<i32>} : memref<32x128xi8, #tpu.memory_space<vmem>>, vector<32x128xi8>,
    } else {
    }
    return
  }
  func.func @transform_0(%arg0: i32, %arg1: i32, %arg2: i32) -> (i32, i32) {
    %c0_i32 = arith.constant 0 : i32
    return %arg0, %arg2 : i32, i32
  }
  func.func @transform_1(%arg0: i32, %arg1: i32, %arg2: i32) -> (i32, i32) {
    %c0_i32 = arith.constant 0 : i32
    return %arg2, %arg1 : i32, i32
  }
  func.func @transform_2(%arg0: i32, %arg1: i32, %arg2: i32) -> (i32, i32) {
    %c0_i32 = arith.constant 0 : i32
    %c0_i32_0 = arith.constant 0 : i32
    return %c0_i32, %arg1 : i32, i32
  }
  func.func @transform_3(%arg0: i32, %arg1: i32, %arg2: i32) -> (i32, i32) {
    %c0_i32 = arith.constant 0 : i32
    return %arg0, %arg1 : i32, i32
  }
}

</mosaic_0001>

<llo_original>
// kernel: tpu_custom_call.1
$region0: #{tpu_custom_call.1}
  #allocation0 [shape = 'u32[]', space=smem, size = 0x4, offset = 0x4, fixed_abs, tag = 'smem constant byte address 0x4 - core index']
  #allocation1 [shape = 'u32[144,128]{1,0:T(1,128)}', space=vmem, size = 0x12000, scoped, tag = 'internal scratch']
  #allocation2 [shape = 's32[32,128]{1,0:T(8,128)}', space=vmem, size = 0x4000, scoped, tag = 'scratch operand']
  %s0 = inlined_call_operand.hbm [shape: s8[32,128], index: 0, kind: input, shape index: {}]
  %s1 = inlined_call_operand.hbm [shape: s8[128,128], index: 1, kind: input, shape index: {}]
  %s2 = inlined_call_operand.vmem [shape: s32[1,128], index: 2, kind: input, shape index: {}]
  %s3 = inlined_call_operand.hbm [shape: s8[32,128], index: 3, kind: output, shape index: {}]
  %s4 = sld [smem:[#allocation0]]
  $region38: #{tpu_custom_call.1} parent=0
    _
  %s6 = ssub.s32 1, %s4
  %s7 = scalar_select 0, %s6, %s4
  $region1: #{tpu_custom_call.1} parent=0
    #allocation3 [shape = 'u8[4096]{0}', space=vmem, size = 0x1000, scoped, tag = 'input window, operand 0, single buffered']
    #allocation4 [shape = 's32[1]{0}', space=sflag, size = 0x4, scoped, tag = 'scoped memory for tpu_custom_call.1']
    #allocation5 [shape = 's32[1]{0}', space=sflag, size = 0x4, scoped, tag = 'scoped memory for tpu_custom_call.1']
    #allocation6 [shape = 'u8[16384]{0}', space=vmem, size = 0x4000, scoped, tag = 'input window, operand 1, single buffered']
    #allocation7 [shape = 's32[1]{0}', space=sflag, size = 0x4, scoped, tag = 'scoped memory for tpu_custom_call.1']
    #allocation8 [shape = 'u8[4096]{0}', space=vmem, size = 0x1000, scoped, tag = 'output window, operand 0, single buffered']
    %8 = vsyncpa [#allocation4], 0
    %9 = vsyncpa [#allocation7], 0
    %10 = vsyncpa [#allocation5], 0
    // Predicated region
    $region2: #{tpu_custom_call.1} parent=1 // pred_check
      _
    $region3: #{tpu_custom_call.1} parent=1 // pred_check_branch
      %12 = sbr.rel (0) target = $region5
    $region4: #{tpu_custom_call.1} parent=1 // pred_region
      %s14 = ssub.s32 128, 128
      %15 = vsyncadd [#allocation4], %s14
      %s17 = sshll.u32 [#allocation3], 4
      %s18 = int_to_ptr.vmem [resolvable:$true] %s17
      %20 = dma.hbm_to_vmem [thread:$0]  %s0, 128, %s18, [#allocation4]
    $region5: #{tpu_custom_call.1} parent=1 // pred_fallthru
      _
    // Predicated region
    $region6: #{tpu_custom_call.1} parent=1 // pred_check
      _
    $region7: #{tpu_custom_call.1} parent=1 // pred_check_branch
      %22 = sbr.rel (0) target = $region9
    $region8: #{tpu_custom_call.1} parent=1 // pred_region
      %s24 = ssub.s32 512, 512
      %25 = vsyncadd [#allocation7], %s24
      %s26 = sshll.u32 [#allocation6], 4
      %s27 = int_to_ptr.vmem [resolvable:$true] %s26
      %32 = dma.hbm_to_vmem [thread:$0]  %s1, 512, %s27, [#allocation7], 128, 128, 8
    $region9: #{tpu_custom_call.1} parent=1 // pred_fallthru
      _
    // Predicated region
    $region10: #{tpu_custom_call.1} parent=1 // pred_check
      _
    $region11: #{tpu_custom_call.1} parent=1 // pred_check_branch
      %34 = sbr.rel (0) target = $region13
    $region12: #{tpu_custom_call.1} parent=1 // pred_region
      _
    $region13: #{tpu_custom_call.1} parent=1 // pred_fallthru
      _
    // Predicated region
    $region14: #{tpu_custom_call.1} parent=1 // pred_check
      _
    $region15: #{tpu_custom_call.1} parent=1 // pred_check_branch
      %36 = sbr.rel (0) target = $region17
    $region16: #{tpu_custom_call.1} parent=1 // pred_region
      %37 = dma.done [#allocation4], 128
    $region17: #{tpu_custom_call.1} parent=1 // pred_fallthru
      _
    // Predicated region
    $region18: #{tpu_custom_call.1} parent=1 // pred_check
      _
    $region19: #{tpu_custom_call.1} parent=1 // pred_check_branch
      %39 = sbr.rel (0) target = $region21
    $region20: #{tpu_custom_call.1} parent=1 // pred_region
      %40 = dma.done [#allocation7], 512
    $region21: #{tpu_custom_call.1} parent=1 // pred_fallthru
      _
    %p42 = scmp.eq.s32.totalorder 0, 0
    // Predicated region
    $region22: #{tpu_custom_call.1} parent=1 // pred_check
      %p43 = pneg %p42
    $region23: #{tpu_custom_call.1} parent=1 // pred_check_branch
      %45 = sbr.rel (%p43) target = $region25
    $region24: #{tpu_custom_call.1} parent=1 // pred_region
      %v46 = vld [vmem:[%s2] sm:$0x1]
      %v47 = vlaneseq
      %v48 = vshrl.u32 %v47, 7
      %v49 = vsub.s32 0, %v48
      %v50 = vrot.slane %v46, %v49
      %51 = vst [vmem:[#allocation2] sm:$0xff] %v50
      %52 = vst [vmem:[#allocation2 + $0x8] sm:$0xff] %v50
      %53 = vst [vmem:[#allocation2 + $0x10] sm:$0xff] %v50
      %54 = vst [vmem:[#allocation2 + $0x18] sm:$0xff] %v50
    $region25: #{tpu_custom_call.1} parent=1 // pred_fallthru
      _
    %v55 = vld [vmem:[#allocation3] sm:$0xff]
    %v56 = vunpack.c.l.s8.bf16 %v55
    %v57 = vunpack.c.h.s8.bf16 %v55
    %v58 = vld [vmem:[#allocation6] sm:$0xff]
    %v59 = vld [vmem:[#allocation6 + $0x8] sm:$0xff]
    %v60 = vld [vmem:[#allocation6 + $0x10] sm:$0xff]
    %v61 = vld [vmem:[#allocation6 + $0x18] sm:$0xff]
    %v62 = vunpack.c.l.s8.bf16 %v58
    %v63 = vunpack.c.h.s8.bf16 %v58
    %v64 = vunpack.c.l.s8.bf16 %v59
    %v65 = vunpack.c.h.s8.bf16 %v59
    %v66 = vunpack.c.l.s8.bf16 %v60
    %v67 = vunpack.c.h.s8.bf16 %v60
    %v68 = vunpack.c.l.s8.bf16 %v61
    %v69 = vunpack.c.h.s8.bf16 %v61
    %70 = vmatprep.subr.bf16.mxu0 0
    %71 = vmatpush1.bf16.msra.mxu0 %v69
    %72 = vmatprep.subr.bf16.mxu0 0
    %73 = vmatpush1.bf16.msra.mxu0 %v68
    %74 = vmatprep.subr.bf16.mxu0 0
    %75 = vmatpush1.bf16.msra.mxu0 %v67
    %76 = vmatprep.subr.bf16.mxu0 0
    %77 = vmatpush1.bf16.msra.mxu0 %v66
    %78 = vmatprep.subr.bf16.mxu0 0
    %79 = vmatpush1.bf16.msra.mxu0 %v65
    %80 = vmatprep.subr.bf16.mxu0 0
    %81 = vmatpush1.bf16.msra.mxu0 %v64
    %82 = vmatprep.subr.bf16.mxu0 0
    %83 = vmatpush1.bf16.msra.mxu0 %v63
    %84 = vmatprep.subr.bf16.mxu0 0
    %85 = vmatpush1.bf16.msra.mxu0 %v62
    %86 = vmatprep.subr.bf16.mxu0 0
    %87 = vmatpush2.bf16.msra.mxu0 0
    %88 = vmatprep.subr.bf16.mxu0 0
    %89 = vmatpush2.bf16.msra.mxu0 0
    %90 = vmatprep.subr.bf16.mxu0 0
    %91 = vmatpush2.bf16.msra.mxu0 0
    %92 = vmatprep.subr.bf16.mxu0 0
    %93 = vmatpush2.bf16.msra.mxu0 0
    %94 = vmatprep.subr.bf16.mxu0 0
    %95 = vmatpush2.bf16.msra.mxu0 0
    %96 = vmatprep.subr.bf16.mxu0 0
    %97 = vmatpush2.bf16.msra.mxu0 0
    %98 = vmatprep.subr.bf16.mxu0 0
    %99 = vmatpush2.bf16.msra.mxu0 0
    %100 = vmatprep.subr.bf16.mxu0 0
    %101 = vmatpush2.bf16.msra.mxu0 0
    %102 = vmatprep.mubr.bf16.mxu0 0
    %103 = vmatmul.mubr.bf16.gmra.mxu0 %v56
    %v104 = vpop.f32.mrf.mxu0
    %v105 = vadd.f32 0.0, %v104
    %v106 = vpop.f32.mrf.mxu0
    %v107 = vpop.f32.mrf.mxu0
    %v108 = vadd.f32 0.0, %v107
    %v109 = vpop.f32.mrf.mxu0
    %110 = vmatprep.mubr.bf16.mxu0 0
    %111 = vmatmul.mubr.bf16.gmra.mxu0 %v57
    %v112 = vpop.f32.mrf.mxu0
    %v113 = vadd.f32 0.0, %v112
    %v114 = vpop.f32.mrf.mxu0
    %v115 = vpop.f32.mrf.mxu0
    %v116 = vadd.f32 0.0, %v115
    %v117 = vpop.f32.mrf.mxu0
    %118 = vdwg.mxu0
    %v119 = vld [vmem:[#allocation2] sm:$0xff]
    %v120 = vld [vmem:[#allocation2 + $0x8] sm:$0xff]
    %v121 = vld [vmem:[#allocation2 + $0x10] sm:$0xff]
    %v122 = vld [vmem:[#allocation2 + $0x18] sm:$0xff]
    %v123 = vcvt.f32.s32.to.zero.pseudo %v105
    %v124 = vcvt.f32.s32.to.zero.pseudo %v108
    %v125 = vcvt.f32.s32.to.zero.pseudo %v113
    %v126 = vcvt.f32.s32.to.zero.pseudo %v116
    %v127 = vadd.s32 %v119, %v123
    %v128 = vadd.s32 %v120, %v124
    %v129 = vadd.s32 %v121, %v125
    %v130 = vadd.s32 %v122, %v126
    %131 = vst [vmem:[#allocation2] sm:$0xff] %v127
    %132 = vst [vmem:[#allocation2 + $0x8] sm:$0xff] %v128
    %133 = vst [vmem:[#allocation2 + $0x10] sm:$0xff] %v129
    %134 = vst [vmem:[#allocation2 + $0x18] sm:$0xff] %v130
    // Predicated region
    $region26: #{tpu_custom_call.1} parent=1 // pred_check
      %p135 = pneg %p42
    $region27: #{tpu_custom_call.1} parent=1 // pred_check_branch
      %137 = sbr.rel (%p135) target = $region29
    $region28: #{tpu_custom_call.1} parent=1 // pred_region
      %v138 = vld [vmem:[#allocation2] sm:$0xff]
      %v139 = vld [vmem:[#allocation2 + $0x8] sm:$0xff]
      %v140 = vld [vmem:[#allocation2 + $0x10] sm:$0xff]
      %v141 = vld [vmem:[#allocation2 + $0x18] sm:$0xff]
      %v142 = vcvt.s32.f32 %v138
      %v143 = vcvt.s32.f32 %v139
      %v144 = vcvt.s32.f32 %v140
      %v145 = vcvt.s32.f32 %v141
      %v146 = vmul.f32 %v142, 0.00024414063
      %v147 = vmul.f32 %v143, 0.00024414063
      %v148 = vmul.f32 %v144, 0.00024414063
      %v149 = vmul.f32 %v145, 0.00024414063
      %v150 = vadd.f32 %v146, -2.0
      %v151 = vadd.f32 %v147, -2.0
      %v152 = vadd.f32 %v148, -2.0
      %v153 = vadd.f32 %v149, -2.0
      %v154 = vround.ne.pseudo %v150
      %v155 = vround.ne.pseudo %v151
      %v156 = vround.ne.pseudo %v152
      %v157 = vround.ne.pseudo %v153
      %v158 = vmax.f32 %v154, -128.0
      %v159 = vmax.f32 %v155, -128.0
      %v160 = vmax.f32 %v156, -128.0
      %v161 = vmax.f32 %v157, -128.0
      %v162 = vmin.f32 %v158, 127.0
      %v163 = vmin.f32 %v159, 127.0
      %v164 = vmin.f32 %v160, 127.0
      %v165 = vmin.f32 %v161, 127.0
      %v166 = vmax.f32 %v162, -128.0
      %v167 = vmax.f32 %v163, -128.0
      %v168 = vmax.f32 %v164, -128.0
      %v169 = vmax.f32 %v165, -128.0
      %v170 = vmin.f32 %v166, 127.0
      %v171 = vmin.f32 %v167, 127.0
      %v172 = vmin.f32 %v168, 127.0
      %v173 = vmin.f32 %v169, 127.0
      %v174 = vcvt.f32.s32.to.zero.pseudo %v170
      %v175 = vcvt.f32.s32.to.zero.pseudo %v171
      %v176 = vcvt.f32.s32.to.zero.pseudo %v172
      %v177 = vcvt.f32.s32.to.zero.pseudo %v173
      %v178 = vpack.c.b16 %v175, %v174
      %v179 = vpack.c.b16 %v177, %v176
      %v180 = vpack.c.b8 %v179, %v178
      %181 = vst [vmem:[#allocation8] sm:$0xff] %v180
    $region29: #{tpu_custom_call.1} parent=1 // pred_fallthru
      _
    // Predicated region
    $region30: #{tpu_custom_call.1} parent=1 // pred_check
      _
    $region31: #{tpu_custom_call.1} parent=1 // pred_check_branch
      %183 = sbr.rel (0) target = $region33
    $region32: #{tpu_custom_call.1} parent=1 // pred_region
      %s185 = ssub.s32 128, 128
      %186 = vsyncadd [#allocation5], %s185
      %s188 = sshll.u32 [#allocation8], 4
      %s189 = int_to_ptr.vmem [resolvable:$true] %s188
      %191 = dma.vmem_to_hbm [thread:$0]  %s189, 128, %s3, [#allocation5]
    $region33: #{tpu_custom_call.1} parent=1 // pred_fallthru
      _
    // Predicated region
    $region34: #{tpu_custom_call.1} parent=1 // pred_check
      _
    $region35: #{tpu_custom_call.1} parent=1 // pred_check_branch
      %193 = sbr.rel (0) target = $region37
    $region36: #{tpu_custom_call.1} parent=1 // pred_region
      %194 = dma.done [#allocation5], 128
    $region37: #{tpu_custom_call.1} parent=1 // pred_fallthru
      _
    %195 = vsyncpa [#allocation4], 1
    %196 = vsyncpa [#allocation7], 1
    %197 = vsyncpa [#allocation5], 1

</llo_original>
